<compile_context>
chip_gen: v5e
topology: v5e:2x2
jax: 0.10.0
libtpu: 0.0.40
codegen_flags: <defaults>
</compile_context>

<pallas_src>
import functools

import jax
import jax.numpy as jnp
import numpy as np
from jax.experimental import pallas as pl
from jax.experimental.pallas import tpu as pltpu


def _round_up(x, m):
    return (x + m - 1) // m * m


# ----------------------------------------------------------------------------
# Kernel 1: LightGCN propagation
#   E_{l+1} = A_hat @ E_l ,  light_out = mean(E_0, ..., E_L)
# computed in transposed layout:  ET_{l+1} = ET_l @ A_hat^T
#
# Grid = (d, l, j, k):
#   d : block of embedding dims (independent -> "parallel", megacore on v7x)
#   l : layer (sequential)
#   j : output node-column block
#   k : reduction node-column block (last, "arbitrary")
# Scratch (per d block): e_cur / e_next / acc, each chunked (n_k, td, blk).
# ----------------------------------------------------------------------------
def _lightgcn_prop_kernel(inv_layers, e0_ref, a_ref, out_ref, e_cur, e_next, acc):
    l = pl.program_id(1)
    j = pl.program_id(2)
    k = pl.program_id(3)
    nj = pl.num_programs(2)
    nk = pl.num_programs(3)

    # First sweep of this d block: load E_0 chunks into the running state.
    @pl.when(jnp.logical_and(l == 0, j == 0))
    def _():
        chunk0 = e0_ref[k]
        e_cur[k] = chunk0
        acc[k] = chunk0

    # Partial product for output chunk j from reduction chunk k.
    # bf16 MXU inputs, f32 accumulation (state is kept in f32).
    part = jnp.dot(e_cur[k].astype(jnp.bfloat16), a_ref[...],
                   preferred_element_type=jnp.float32)

    @pl.when(k == 0)
    def _():
        e_next[j] = part

    @pl.when(k > 0)
    def _():
        e_next[j] = e_next[j] + part

    # Reduction for chunk j of this layer finished: fold E_{l+1} chunk into the
    # layer-sum accumulator and emit the running mean (final layer's write wins,
    # every writeback carries valid data).
    @pl.when(k == nk - 1)
    def _():
        new_acc = acc[j] + e_next[j]
        acc[j] = new_acc
        out_ref[...] = new_acc * inv_layers

    # Layer finished: promote E_{l+1} -> E_l.
    @pl.when(jnp.logical_and(k == nk - 1, j == nj - 1))
    def _():
        e_cur[...] = e_next[...]


def lightgcn_propagate(norm_adj, all_emb, num_layers, *, block_nk=None, block_d=None):
    """norm_adj: (N, N) f32, all_emb: (N, D) f32.

    Returns light_out in transposed layout, shape (D_pad, N_pad), f32.
    """
    N, D = all_emb.shape
    if block_nk is None:
        block_nk = 256 if N >= 256 else 128     # 256-wide tiles fill the v6e/v7x MXU
    block_nk = _round_up(block_nk, 128)
    if block_d is None:
        block_d = _round_up(D, 8)
    block_d = _round_up(block_d, 8)

    D_pad = _round_up(D, block_d)
    N_pad = _round_up(N, block_nk)
    n_nk = N_pad // block_nk
    n_d = D_pad // block_d
    L = int(num_layers)

    # E_0 transposed, zero padded, chunked along the node axis so the kernel
    # indexes chunks on a leading (non-tiled) axis.
    e0_t = jnp.zeros((D_pad, N_pad), jnp.float32).at[:D, :N].set(all_emb.T)
    e0_blocked = e0_t.reshape(D_pad, n_nk, block_nk).transpose(1, 0, 2)  # (n_nk, D_pad, blk)

    # A_hat^T, zero padded, streamed as bf16 tiles (halves HBM traffic / VMEM).
    adj_t = jnp.zeros((N_pad, N_pad), jnp.float32).at[:N, :N].set(norm_adj.T)
    adj_t = adj_t.astype(jnp.bfloat16)

    grid = (n_d, L, n_nk, n_nk)

    # VMEM budget (double-buffered pipelined blocks + persistent scratch).
    # TODO(synk): pipeline_mode=pl.Buffered(1) on the constant E_0 block would
    # drop its second buffer for very large graphs.
    a_bytes = block_nk * block_nk * 2 * 2
    e0_bytes = n_nk * block_d * block_nk * 4 * 2
    out_bytes = block_d * block_nk * 4 * 2
    scratch_bytes = 3 * n_nk * block_d * block_nk * 4
    total = a_bytes + e0_bytes + out_bytes + scratch_bytes
    vmem_limit = int(min(max(int(total * 1.5), 16 * 1024 * 1024), 64 * 1024 * 1024))

    cost = pl.CostEstimate(
        flops=2 * L * D_pad * N_pad * N_pad,
        transcendentals=0,
        bytes_accessed=n_d * L * N_pad * N_pad * 2 + D_pad * N_pad * 4 * (1 + L))

    light_out_t = pl.pallas_call(
        functools.partial(_lightgcn_prop_kernel, 1.0 / float(L + 1)),
        out_shape=jax.ShapeDtypeStruct((D_pad, N_pad), jnp.float32),
        grid_spec=pltpu.PrefetchScalarGridSpec(
            num_scalar_prefetch=0,
            grid=grid,
            in_specs=[
                # E_0 chunks: block index constant across (l, j, k) -> DMA'd once per d.
                pl.BlockSpec((n_nk, block_d, block_nk), lambda d, l, j, k: (0, d, 0)),
                # A_hat^T tile feeding output chunk j from reduction chunk k.
                pl.BlockSpec((block_nk, block_nk), lambda d, l, j, k: (k, j)),
            ],
            out_specs=pl.BlockSpec((block_d, block_nk), lambda d, l, j, k: (d, j)),
            scratch_shapes=[pltpu.VMEM((n_nk, block_d, block_nk), jnp.float32)] * 3,
        ),
        compiler_params=pltpu.CompilerParams(
            dimension_semantics=("parallel", "arbitrary", "arbitrary", "arbitrary"),
            vmem_limit_bytes=vmem_limit),
        cost_estimate=cost,
    )(e0_blocked, adj_t)

    return light_out_t


# ----------------------------------------------------------------------------
# Kernel 2: BPR-style pairwise loss (lane-dense: batch on the lane axis)
#   pos = sum_d u*p ; neg = sum_d u*n ; loss = softplus(neg - pos) + reg*L1
# Inputs are (D_pad, B_block) tiles; output is (1, B_block) per grid step.
# The scalar reg * (||u0||_1 + ||p0||_1 + ||n0||_1) arrives via SMEM.
# ----------------------------------------------------------------------------
def _bpr_loss_kernel(reg_l1_ref, u_ref, p_ref, n_ref, out_ref):
    u = u_ref[...]
    pos_score = jnp.sum(u * p_ref[...], axis=0, keepdims=True)   # (1, B_block)
    neg_score = jnp.sum(u * n_ref[...], axis=0, keepdims=True)
    x = neg_score - pos_score
    softplus = jnp.maximum(x, 0.0) + jnp.log1p(jnp.exp(-jnp.abs(x)))
    # NOTE: reg * L1 is a single scalar added to every per-example loss,
    # matching the reference module's `batch_loss + reg_loss` broadcast.
    out_ref[...] = softplus + reg_l1_ref[0]


def lightgcn_forward(norm_adj, user_emb, item_emb, user, pos, neg, num_layers, reg,
                     *, block_nk=None, block_d=None, block_b=128):
    num_users, D = user_emb.shape
    num_items = item_emb.shape[0]
    all_emb = jnp.concatenate([user_emb, item_emb], axis=0)

    light_out_t = lightgcn_propagate(norm_adj, all_emb, num_layers,
                                     block_nk=block_nk, block_d=block_d)  # (D_pad, N_pad)

    u_emb_t = light_out_t[:, :num_users]
    i_emb_t = light_out_t[:, num_users:num_users + num_items]

    # Embedding-table gathers (F.embedding equivalents) kept as XLA glue in the
    # already-transposed (D, B) layout.
    # TODO(synk): could be fused into the loss kernel via scalar-prefetch-driven
    # row-gather BlockSpecs for very large batches.
    user_lat_t = u_emb_t[:, user]
    pos_lat_t = i_emb_t[:, pos]
    neg_lat_t = i_emb_t[:, neg]

    # Scalar regularizer over the ego embeddings (global over the batch, so it is
    # reduced once in XLA and fed to the tiled loss kernel via SMEM).
    reg_l1 = reg * (jnp.sum(jnp.abs(user_emb[user])) +
                    jnp.sum(jnp.abs(item_emb[pos])) +
                    jnp.sum(jnp.abs(item_emb[neg])))
    reg_l1 = jnp.reshape(reg_l1, (1,)).astype(jnp.float32)

    B = user.shape[0]
    D_pad = user_lat_t.shape[0]
    B_pad = _round_up(max(B, block_b), block_b)

    def pad_b(x):
        return jnp.zeros((D_pad, B_pad), jnp.float32).at[:, :B].set(x)

    u_p, p_p, n_p = pad_b(user_lat_t), pad_b(pos_lat_t), pad_b(neg_lat_t)

    loss = pl.pallas_call(
        _bpr_loss_kernel,
        out_shape=jax.ShapeDtypeStruct((1, B_pad), jnp.float32),
        grid=(B_pad // block_b,),
        in_specs=[
            pl.BlockSpec(memory_space=pltpu.MemorySpace.SMEM),
            pl.BlockSpec((D_pad, block_b), lambda b: (0, b)),
            pl.BlockSpec((D_pad, block_b), lambda b: (0, b)),
            pl.BlockSpec((D_pad, block_b), lambda b: (0, b)),
        ],
        out_specs=pl.BlockSpec((1, block_b), lambda b: (0, b)),
        compiler_params=pltpu.CompilerParams(dimension_semantics=("parallel",)),
    )(reg_l1, u_p, p_p, n_p)

    return loss[0, :B]


# ----------------------------------------------------------------------------
# Pure-JAX reference (mirrors the kernel's bf16 matmul inputs / f32 accumulation)
# ----------------------------------------------------------------------------
def lightgcn_forward_ref(norm_adj, user_emb, item_emb, user, pos, neg,
                         num_layers, reg):
    num_users = user_emb.shape[0]
    all_emb = jnp.concatenate([user_emb, item_emb], axis=0)
    a_bf16 = norm_adj.astype(jnp.bfloat16)
    embs = [all_emb]
    e = all_emb
    for _ in range(num_layers):
        e = jnp.dot(a_bf16, e.astype(jnp.bfloat16),
                    preferred_element_type=jnp.float32)
        embs.append(e)
    light_out = jnp.mean(jnp.stack(embs, axis=1), axis=1)
    u_embedding, i_embedding = light_out[:num_users], light_out[num_users:]
    ul = u_embedding[user]
    plat = i_embedding[pos]
    nl = i_embedding[neg]
    pos_score = jnp.sum(ul * plat, axis=1)
    neg_score = jnp.sum(ul * nl, axis=1)
    batch_loss = jax.nn.softplus(neg_score - pos_score)
    reg_loss = reg * (jnp.sum(jnp.abs(user_emb[user])) +
                      jnp.sum(jnp.abs(item_emb[pos])) +
                      jnp.sum(jnp.abs(item_emb[neg])))
    return batch_loss + reg_loss


if __name__ == "__main__":
    num_users, num_items = 112, 144        # N = 256 -> two 128-wide node blocks
    emb_dim = 32
    num_layers = 3
    batch = 8
    reg = 1e-4

    key = jax.random.PRNGKey(0)
    k_u, k_i, k_r, k_user, k_pos, k_neg = jax.random.split(key, 6)

    # nn.init.normal_(weight, 0, 0.01)
    user_emb = 0.01 * jax.random.normal(k_u, (num_users, emb_dim), jnp.float32)
    item_emb = 0.01 * jax.random.normal(k_i, (num_items, emb_dim), jnp.float32)

    # Synthetic interactions -> symmetric normalized adjacency D^-1/2 A D^-1/2
    R = (jax.random.uniform(k_r, (num_users, num_items)) < 0.15).astype(jnp.float32)
    N = num_users + num_items
    A = jnp.zeros((N, N), jnp.float32)
    A = A.at[:num_users, num_users:].set(R)
    A = A.at[num_users:, :num_users].set(R.T)
    rowsum = A.sum(axis=1)
    d_inv = jnp.where(rowsum > 0, rowsum ** -0.5, 0.0)
    norm_adj = d_inv[:, None] * A * d_inv[None, :]

    user = jax.random.randint(k_user, (batch,), 0, num_users, jnp.int32)
    pos = jax.random.randint(k_pos, (batch,), 0, num_items, jnp.int32)
    neg = jax.random.randint(k_neg, (batch,), 0, num_items, jnp.int32)

    # block_nk=128 / block_d=16 exercise multi-block j/k and multi d-block paths.
    loss = lightgcn_forward(norm_adj, user_emb, item_emb, user, pos, neg,
                            num_layers, reg, block_nk=128, block_d=16)
    loss = jax.block_until_ready(loss)

    loss_ref = lightgcn_forward_ref(norm_adj, user_emb, item_emb, user, pos,
                                    neg, num_layers, reg)
    np.testing.assert_allclose(np.asarray(loss), np.asarray(loss_ref),
                               rtol=2e-4, atol=1e-5)

    # TODO(synk): node_dropout on the sparse graph, the split/fold sparse path,
    # and the training loop are outside the forward hot path and not reproduced.
    print("KERNEL_OK")
</pallas_src>

<mosaic_0001>
module attributes {stable_mosaic.version = 11 : i64} {
  func.func @_lightgcn_prop_kernel(%arg0: i32, %arg1: i32, %arg2: i32, %arg3: i32, %arg4: memref<2x16x128xf32, #tpu.memory_space<vmem>>, %arg5: memref<128x128xbf16, #tpu.memory_space<vmem>>, %arg6: memref<16x128xf32, #tpu.memory_space<vmem>>, %arg7: memref<2x16x128xf32, #tpu.memory_space<vmem>>, %arg8: memref<2x16x128xf32, #tpu.memory_space<vmem>>, %arg9: memref<2x16x128xf32, #tpu.memory_space<vmem>>) attributes {dimension_semantics = [#tpu.dimension_semantics<parallel>, #tpu.dimension_semantics<arbitrary>, #tpu.dimension_semantics<arbitrary>, #tpu.dimension_semantics<arbitrary>], iteration_bounds = array<i64: 2, 3, 2, 2>, scalar_prefetch = 0 : i64, scratch_operands = 3 : i64, tpu.core_type = #tpu.core_type<tc>, window_params = [{transform_indices = @transform_0, window_bounds = array<i64: 2, 16, 128>}, {transform_indices = @transform_1, window_bounds = array<i64: 128, 128>}, {transform_indices = @transform_2, window_bounds = array<i64: 16, 128>}]} {
    %c0_i32 = arith.constant 0 : i32
    %0 = arith.cmpi eq, %arg1, %c0_i32 : i32
    %c0_i32_0 = arith.constant 0 : i32
    %1 = arith.cmpi eq, %arg2, %c0_i32_0 : i32
    %2 = arith.andi %0, %1 : i1
    %3 = arith.extui %2 : i1 to i32
    %c0_i32_1 = arith.constant 0 : i32
    %4 = arith.cmpi ne, %3, %c0_i32_1 : i32
    scf.if %4 {
      %25 = arith.index_cast %arg3 : i32 to index
      %c0_13 = arith.constant 0 : index
      %c0_14 = arith.constant 0 : index
      %26 = vector.load %arg4[%25, %c0_13, %c0_14] : memref<2x16x128xf32, #tpu.memory_space<vmem>>, vector<1x16x128xf32>
      %27 = vector.shape_cast %26 : vector<1x16x128xf32> to vector<16x128xf32>
      %28 = arith.index_cast %arg3 : i32 to index
      %c0_15 = arith.constant 0 : index
      %c0_16 = arith.constant 0 : index
      %29 = vector.load %arg7[%28, %c0_15, %c0_16] : memref<2x16x128xf32, #tpu.memory_space<vmem>>, vector<1x16x128xf32>
      %30 = vector.shape_cast %29 : vector<1x16x128xf32> to vector<16x128xf32>
      %31 = vector.shape_cast %27 : vector<16x128xf32> to vector<1x16x128xf32>
      tpu.vector_store %arg7[%28, %c0_15, %c0_16], %31 {strides = array<i32>} : memref<2x16x128xf32, #tpu.memory_space<vmem>>, vector<1x16x128xf32>,
      %32 = arith.index_cast %arg3 : i32 to index
      %c0_17 = arith.constant 0 : index
      %c0_18 = arith.constant 0 : index
      %33 = vector.load %arg9[%32, %c0_17, %c0_18] : memref<2x16x128xf32, #tpu.memory_space<vmem>>, vector<1x16x128xf32>
      %34 = vector.shape_cast %33 : vector<1x16x128xf32> to vector<16x128xf32>
      %35 = vector.shape_cast %27 : vector<16x128xf32> to vector<1x16x128xf32>
      tpu.vector_store %arg9[%32, %c0_17, %c0_18], %35 {strides = array<i32>} : memref<2x16x128xf32, #tpu.memory_space<vmem>>, vector<1x16x128xf32>,
    } else {
    }
    %5 = arith.index_cast %arg3 : i32 to index
    %c0 = arith.constant 0 : index
    %c0_2 = arith.constant 0 : index
    %6 = vector.load %arg7[%5, %c0, %c0_2] : memref<2x16x128xf32, #tpu.memory_space<vmem>>, vector<1x16x128xf32>
    %7 = vector.shape_cast %6 : vector<1x16x128xf32> to vector<16x128xf32>
    %8 = arith.truncf %7 : vector<16x128xf32> to vector<16x128xbf16>
    %c0_3 = arith.constant 0 : index
    %c0_4 = arith.constant 0 : index
    %9 = vector.load %arg5[%c0_3, %c0_4] : memref<128x128xbf16, #tpu.memory_space<vmem>>, vector<128x128xbf16>
    %cst = arith.constant dense<0.000000e+00> : vector<16x128xf32>
    %10 = tpu.matmul %8, %9, %cst {dimension_numbers = #tpu.dot_dimension_numbers<[1], [0], [0], [1], [0, 0, 1, 1], [], []>} : vector<16x128xbf16>, vector<128x128xbf16>, vector<16x128xf32> -> vector<16x128xf32>
    %c0_i32_5 = arith.constant 0 : i32
    %11 = arith.cmpi eq, %arg3, %c0_i32_5 : i32
    %12 = arith.extui %11 : i1 to i32
    %c0_i32_6 = arith.constant 0 : i32
    %13 = arith.cmpi ne, %12, %c0_i32_6 : i32
    scf.if %13 {
      %25 = arith.index_cast %arg2 : i32 to index
      %c0_13 = arith.constant 0 : index
      %c0_14 = arith.constant 0 : index
      %26 = vector.load %arg8[%25, %c0_13, %c0_14] : memref<2x16x128xf32, #tpu.memory_space<vmem>>, vector<1x16x128xf32>
      %27 = vector.shape_cast %26 : vector<1x16x128xf32> to vector<16x128xf32>
      %28 = vector.shape_cast %10 : vector<16x128xf32> to vector<1x16x128xf32>
      tpu.vector_store %arg8[%25, %c0_13, %c0_14], %28 {strides = array<i32>} : memref<2x16x128xf32, #tpu.memory_space<vmem>>, vector<1x16x128xf32>,
    } else {
    }
    %c0_i32_7 = arith.constant 0 : i32
    %14 = arith.cmpi sgt, %arg3, %c0_i32_7 : i32
    %15 = arith.extui %14 : i1 to i32
    %c0_i32_8 = arith.constant 0 : i32
    %16 = arith.cmpi ne, %15, %c0_i32_8 : i32
    scf.if %16 {
      %25 = arith.index_cast %arg2 : i32 to index
      %c0_13 = arith.constant 0 : index
      %c0_14 = arith.constant 0 : index
      %26 = vector.load %arg8[%25, %c0_13, %c0_14] : memref<2x16x128xf32, #tpu.memory_space<vmem>>, vector<1x16x128xf32>
      %27 = vector.shape_cast %26 : vector<1x16x128xf32> to vector<16x128xf32>
      %28 = arith.addf %27, %10 : vector<16x128xf32>
      %29 = arith.index_cast %arg2 : i32 to index
      %c0_15 = arith.constant 0 : index
      %c0_16 = arith.constant 0 : index
      %30 = vector.load %arg8[%29, %c0_15, %c0_16] : memref<2x16x128xf32, #tpu.memory_space<vmem>>, vector<1x16x128xf32>
      %31 = vector.shape_cast %30 : vector<1x16x128xf32> to vector<16x128xf32>
      %32 = vector.shape_cast %28 : vector<16x128xf32> to vector<1x16x128xf32>
      tpu.vector_store %arg8[%29, %c0_15, %c0_16], %32 {strides = array<i32>} : memref<2x16x128xf32, #tpu.memory_space<vmem>>, vector<1x16x128xf32>,
    } else {
    }
    %c1_i32 = arith.constant 1 : i32
    %17 = arith.cmpi eq, %arg3, %c1_i32 : i32
    %18 = arith.extui %17 : i1 to i32
    %c0_i32_9 = arith.constant 0 : i32
    %19 = arith.cmpi ne, %18, %c0_i32_9 : i32
    scf.if %19 {
      %25 = arith.index_cast %arg2 : i32 to index
      %c0_13 = arith.constant 0 : index
      %c0_14 = arith.constant 0 : index
      %26 = vector.load %arg9[%25, %c0_13, %c0_14] : memref<2x16x128xf32, #tpu.memory_space<vmem>>, vector<1x16x128xf32>
      %27 = vector.shape_cast %26 : vector<1x16x128xf32> to vector<16x128xf32>
      %28 = arith.index_cast %arg2 : i32 to index
      %c0_15 = arith.constant 0 : index
      %c0_16 = arith.constant 0 : index
      %29 = vector.load %arg8[%28, %c0_15, %c0_16] : memref<2x16x128xf32, #tpu.memory_space<vmem>>, vector<1x16x128xf32>
      %30 = vector.shape_cast %29 : vector<1x16x128xf32> to vector<16x128xf32>
      %31 = arith.addf %27, %30 : vector<16x128xf32>
      %32 = arith.index_cast %arg2 : i32 to index
      %c0_17 = arith.constant 0 : index
      %c0_18 = arith.constant 0 : index
      %33 = vector.load %arg9[%32, %c0_17, %c0_18] : memref<2x16x128xf32, #tpu.memory_space<vmem>>, vector<1x16x128xf32>
      %34 = vector.shape_cast %33 : vector<1x16x128xf32> to vector<16x128xf32>
      %35 = vector.shape_cast %31 : vector<16x128xf32> to vector<1x16x128xf32>
      tpu.vector_store %arg9[%32, %c0_17, %c0_18], %35 {strides = array<i32>} : memref<2x16x128xf32, #tpu.memory_space<vmem>>, vector<1x16x128xf32>,
      %cst_19 = arith.constant 2.500000e-01 : f32
      %36 = vector.broadcast %cst_19 : f32 to vector<16x128xf32>
      %37 = arith.mulf %31, %36 : vector<16x128xf32>
      %c0_20 = arith.constant 0 : index
      %c0_21 = arith.constant 0 : index
      %38 = vector.load %arg6[%c0_20, %c0_21] : memref<16x128xf32, #tpu.memory_space<vmem>>, vector<16x128xf32>
      tpu.vector_store %arg6[%c0_20, %c0_21], %37 {strides = array<i32>} : memref<16x128xf32, #tpu.memory_space<vmem>>, vector<16x128xf32>,
    } else {
    }
    %c1_i32_10 = arith.constant 1 : i32
    %20 = arith.cmpi eq, %arg3, %c1_i32_10 : i32
    %c1_i32_11 = arith.constant 1 : i32
    %21 = arith.cmpi eq, %arg2, %c1_i32_11 : i32
    %22 = arith.andi %20, %21 : i1
    %23 = arith.extui %22 : i1 to i32
    %c0_i32_12 = arith.constant 0 : i32
    %24 = arith.cmpi ne, %23, %c0_i32_12 : i32
    scf.if %24 {
      %c0_13 = arith.constant 0 : index
      %c0_14 = arith.constant 0 : index
      %c0_15 = arith.constant 0 : index
      %25 = vector.load %arg8[%c0_13, %c0_14, %c0_15] : memref<2x16x128xf32, #tpu.memory_space<vmem>>, vector<2x16x128xf32>
      %c0_16 = arith.constant 0 : index
      %c0_17 = arith.constant 0 : index
      %c0_18 = arith.constant 0 : index
      %26 = vector.load %arg7[%c0_16, %c0_17, %c0_18] : memref<2x16x128xf32, #tpu.memory_space<vmem>>, vector<2x16x128xf32>
      tpu.vector_store %arg7[%c0_16, %c0_17, %c0_18], %25 {strides = array<i32>} : memref<2x16x128xf32, #tpu.memory_space<vmem>>, vector<2x16x128xf32>,
    } else {
    }
    return
  }
  func.func @transform_0(%arg0: i32, %arg1: i32, %arg2: i32, %arg3: i32) -> (i32, i32, i32) {
    %c0_i32 = arith.constant 0 : i32
    %c0_i32_0 = arith.constant 0 : i32
    %c0_i32_1 = arith.constant 0 : i32
    return %c0_i32, %arg0, %c0_i32_0 : i32, i32, i32
  }
  func.func @transform_1(%arg0: i32, %arg1: i32, %arg2: i32, %arg3: i32) -> (i32, i32) {
    %c0_i32 = arith.constant 0 : i32
    return %arg3, %arg2 : i32, i32
  }
  func.func @transform_2(%arg0: i32, %arg1: i32, %arg2: i32, %arg3: i32) -> (i32, i32) {
    %c0_i32 = arith.constant 0 : i32
    return %arg0, %arg2 : i32, i32
  }
}

</mosaic_0001>

<llo_original>
// kernel: tpu_custom_call.1
$region0: #{tpu_custom_call.1}
  #allocation0 [shape = 'u32[]', space=smem, size = 0x4, offset = 0x4, fixed_abs, tag = 'smem constant byte address 0x4 - core index']
  #allocation1 [shape = 'u32[72,128]{1,0:T(1,128)}', space=vmem, size = 0x9000, scoped, tag = 'internal scratch']
  #allocation2 [shape = 'f32[2,16,128]{2,1,0:T(8,128)}', space=vmem, size = 0x4000, scoped, tag = 'scratch operand']
  #allocation3 [shape = 'f32[2,16,128]{2,1,0:T(8,128)}', space=vmem, size = 0x4000, scoped, tag = 'scratch operand']
  #allocation4 [shape = 'f32[2,16,128]{2,1,0:T(8,128)}', space=vmem, size = 0x4000, scoped, tag = 'scratch operand']
  #allocation11 [shape = 's32[]', space=sflag, size = 0x4, offset = 0, fixed_abs, tag = 'sflag constant byte address 0x0 - dummy sync flag']
  %s0 = inlined_call_operand.hbm [shape: f32[2,32,128], index: 0, kind: input, shape index: {}]
  %s1 = inlined_call_operand.hbm [shape: bf16[256,256], index: 1, kind: input, shape index: {}]
  %s2 = inlined_call_operand.hbm [shape: f32[32,256], index: 2, kind: output, shape index: {}]
  %s3 = sld [smem:[#allocation0]]
  $region69: #{tpu_custom_call.1} parent=0
    _
  %s5 = ssub.s32 1, %s3
  %s6 = scalar_select 0, %s5, %s3
  $region1: #{tpu_custom_call.1} parent=0
    #allocation5 [shape = 'u8[32768]{0}', space=vmem, size = 0x8000, scoped, tag = 'input window, operand 0']
    #allocation6 [shape = 's32[2]{0}', space=sflag, size = 0x8, scoped, tag = 'scoped memory for tpu_custom_call.1']
    #allocation7 [shape = 's32[2]{0}', space=sflag, size = 0x8, scoped, tag = 'scoped memory for tpu_custom_call.1']
    #allocation8 [shape = 'u8[65536]{0}', space=vmem, size = 0x10000, scoped, tag = 'input window, operand 1']
    #allocation9 [shape = 's32[2]{0}', space=sflag, size = 0x8, scoped, tag = 'scoped memory for tpu_custom_call.1']
    #allocation10 [shape = 'u8[16384]{0}', space=vmem, size = 0x4000, scoped, tag = 'output window, operand 0']
    %7 = vsyncpa [#allocation6], 0
    %s8 = scalar_lea.sflag [#allocation6], 1
    %9 = vsyncpa %s8, 0
    %10 = vsyncpa [#allocation9], 0
    %s11 = scalar_lea.sflag [#allocation9], 1
    %12 = vsyncpa %s11, 0
    %13 = vsyncpa [#allocation7], 0
    %s14 = scalar_lea.sflag [#allocation7], 1
    %15 = vsyncpa %s14, 0
    loop: start=0, step=1, limit=26
    $region2: #{tpu_custom_call.1} parent=1 // loop_pre_header
      _
    $region3: #{tpu_custom_call.1} parent=1 // loop_header
      %s17 = sphi 0, %s21
      %p18 = scmp.ge.s32.totalorder %s17, 26
      %s24 = sphi 0, %s50
      %s25 = sphi 0, %s46
      %s26 = sphi 0, %s42
      %s27 = sphi 0, %s38
      %s28 = sphi 0, %s24
      %s29 = sphi 0, %s25
      %s30 = sphi 0, %s26
      %s31 = sphi 0, %s27
      %s32 = sphi 0, %s28
      %s33 = sphi 0, %s29
      %s34 = sphi 0, %s30
      %s35 = sphi 0, %s31
      %s53 = sphi 0, %s55
      %s56 = sphi 0, %s53
      %s57 = sphi 0, %s56
      %s73 = sphi 0, %s57
      %s81 = sphi 0, %s83
      %s84 = sphi 0, %s81
      %s85 = sphi 0, %s84
      %s101 = sphi 0, %s85
      %s109 = sphi 0, %s111
      %s112 = sphi 0, %s109
      %s113 = sphi 0, %s112
      %s129 = sphi 0, %s113
    $region4: #{tpu_custom_call.1} parent=1 // loop_header_branch
      %20 = sbr.rel (%p18) target = $region8
    $region5: #{tpu_custom_call.1} parent=1 // loop_body
      %s22 = ssub.s32 %s17, 1
      %s23 = ssub.s32 %s17, 2
      %s36 = sadd.s32 1, %s27
      %p37 = scmp.ge.s32.totalorder %s36, 2
      %s38 = scalar_select %p37, 0, %s36
      %s39 = sadd.s32 1, %s26
      %s40 = scalar_select %p37, %s39, %s26
      %p41 = scmp.ge.s32.totalorder %s40, 2
      %s42 = scalar_select %p41, 0, %s40
      %s43 = sadd.s32 1, %s25
      %s44 = scalar_select %p41, %s43, %s25
      %p45 = scmp.ge.s32.totalorder %s44, 3
      %s46 = scalar_select %p45, 0, %s44
      %s47 = sadd.s32 1, %s24
      %s48 = scalar_select %p45, %s47, %s24
      %p49 = scmp.ge.s32.totalorder %s48, 2
      %s50 = scalar_select %p49, 0, %s48
      %s51 = ssub.s32 %s24, %s50
      %p52 = scmp.eq.s32.totalorder %s51, 0
      %s54 = sadd.s32 %s53, 1
      %s55 = scalar_select %p52, %s53, %s54
      %p58 = pneg %p52
      %p59 = scmp.eq.s32.totalorder %s17, 23
      %p60 = por %p58, %p59
      %p61 = scmp.ne.s32.totalorder %s53, %s56
      %p62 = scmp.eq.s32.totalorder %s17, 0
      %p63 = por %p61, %p62
      %p64 = scmp.ne.s32.totalorder %s53, %s56
      %p65 = scmp.eq.s32.totalorder %s22, 23
      %p66 = por %p64, %p65
      %p67 = scmp.ne.s32.totalorder %s56, %s57
      %p68 = scmp.eq.s32.totalorder %s22, 0
      %p69 = por %p67, %p68
      %p70 = scmp.ne.s32.totalorder %s56, %s57
      %p71 = scmp.eq.s32.totalorder %s23, 23
      %p72 = por %p70, %p71
      %p74 = scmp.ne.s32.totalorder %s57, %s73
      %p75 = scmp.eq.s32.totalorder %s23, 0
      %p76 = por %p74, %p75
      %s77 = ssub.s32 %s27, %s38
      %s78 = ssub.s32 %s26, %s42
      %s79 = sor.u32 %s77, %s78
      %p80 = scmp.eq.s32.totalorder %s79, 0
      %s82 = sadd.s32 %s81, 1
      %s83 = scalar_select %p80, %s81, %s82
      %p86 = pneg %p80
      %p87 = scmp.eq.s32.totalorder %s17, 23
      %p88 = por %p86, %p87
      %p89 = scmp.ne.s32.totalorder %s81, %s84
      %p90 = scmp.eq.s32.totalorder %s17, 0
      %p91 = por %p89, %p90
      %p92 = scmp.ne.s32.totalorder %s81, %s84
      %p93 = scmp.eq.s32.totalorder %s22, 23
      %p94 = por %p92, %p93
      %p95 = scmp.ne.s32.totalorder %s84, %s85
      %p96 = scmp.eq.s32.totalorder %s22, 0
      %p97 = por %p95, %p96
      %p98 = scmp.ne.s32.totalorder %s84, %s85
      %p99 = scmp.eq.s32.totalorder %s23, 23
      %p100 = por %p98, %p99
      %p102 = scmp.ne.s32.totalorder %s85, %s101
      %p103 = scmp.eq.s32.totalorder %s23, 0
      %p104 = por %p102, %p103
      %s105 = ssub.s32 %s24, %s50
      %s106 = ssub.s32 %s26, %s42
      %s107 = sor.u32 %s105, %s106
      %p108 = scmp.eq.s32.totalorder %s107, 0
      %s110 = sadd.s32 %s109, 1
      %s111 = scalar_select %p108, %s109, %s110
      %p114 = pneg %p108
      %p115 = scmp.eq.s32.totalorder %s17, 23
      %p116 = por %p114, %p115
      %p117 = scmp.ne.s32.totalorder %s109, %s112
      %p118 = scmp.eq.s32.totalorder %s17, 0
      %p119 = por %p117, %p118
      %p120 = scmp.ne.s32.totalorder %s109, %s112
      %p121 = scmp.eq.s32.totalorder %s22, 23
      %p122 = por %p120, %p121
      %p123 = scmp.ne.s32.totalorder %s112, %s113
      %p124 = scmp.eq.s32.totalorder %s22, 0
      %p125 = por %p123, %p124
      %p126 = scmp.ne.s32.totalorder %s112, %s113
      %p127 = scmp.eq.s32.totalorder %s23, 23
      %p128 = por %p126, %p127
      %p130 = scmp.ne.s32.totalorder %s113, %s129
      %p131 = scmp.eq.s32.totalorder %s23, 0
      %p132 = por %p130, %p131
      %p133 = scmp.le.s32.totalorder 1, %s17
      %p134 = scmp.lt.s32.totalorder %s17, 25
      %p135 = pnand %p133, %p134
      %p136 = pneg %p135
      // Predicated region
      $region9: #{tpu_custom_call.1} parent=5 // pred_check
        _
      $region10: #{tpu_custom_call.1} parent=5 // pred_check_branch
        %138 = sbr.rel (%p135) target = $region12
      $region11: #{tpu_custom_call.1} parent=5 // pred_region
        %s139 = ssub.s32 %s17, 1
      $region12: #{tpu_custom_call.1} parent=5 // pred_fallthru
        _
      %p140 = scmp.lt.s32.totalorder %s17, 24
      // Predicated region
      $region13: #{tpu_custom_call.1} parent=5 // pred_check
        %p141 = pneg %p140
      $region14: #{tpu_custom_call.1} parent=5 // pred_check_branch
        %143 = sbr.rel (%p141) target = $region16
      $region15: #{tpu_custom_call.1} parent=5 // pred_region
        // Predicated region
        $region17: #{tpu_custom_call.1} parent=15 // pred_check
          %p144 = pneg %p63
        $region18: #{tpu_custom_call.1} parent=15 // pred_check_branch
          %146 = sbr.rel (%p144) target = $region20
        $region19: #{tpu_custom_call.1} parent=15 // pred_region
          #allocation12 [shape = 'u32[6]{0}', space=smem, size = 0x18, scoped, tag = 'DMA stride descriptor']
          %s147 = sand.u32 %s53, 1
          %s148 = scalar_lea.sflag [#allocation6], %s147
          %s149 = sand.u32 %s53, 1
          %s150 = smul.addr %s149, 32
          %s151 = scalar_lea.vmem [#allocation5], %s150
          %s152 = smul.u32 2, %s24
          %154 = vsyncadd %s148, 0
          %s155 = smul.addr %s152, 8
          %s156 = scalar_lea.hbm %s0, %s155
          %s158 = sshll.u32 1, 14
          %s159 = sxor.u32 4294967295, %s158
          %s161 = sld [smem:[#allocation0]]
          %s162 = sadd.s32 2, %s161
          %s164 = sshll.u32 7, 26
          %s165 = sxor.u32 4294967295, %s164
          %s166 = sand.u32 0, %s165
          %s167 = sshll.u32 %s162, 26
          %s168 = sor.u32 %s166, %s167
          %s169 = sshll.u32 %s156, 4
          %s170 = int_to_ptr.hbm [resolvable:$true] %s169
          %s171 = sshll.u32 %s151, 4
          %s172 = int_to_ptr.vmem [resolvable:$true] %s171
          %178 = sst [smem:[#allocation12]] 512
          %s179 = scalar_lea.smem [#allocation12], 1
          %180 = sst [smem:[%s179]] 256
          %s181 = scalar_lea.smem [#allocation12], 2
          %182 = sst [smem:[%s181]] 2
          %s183 = scalar_lea.smem [#allocation12], 3
          %184 = sst [smem:[%s183]] 128
          %s185 = scalar_lea.smem [#allocation12], 4
          %186 = sst [smem:[%s185]] 128
          %s187 = scalar_lea.smem [#allocation12], 5
          %188 = sst [smem:[%s187]] 8
          %190 = dma.general %s170, 512, %s172, %s148, [#allocation11], [#allocation12], %s168, 0
        $region20: #{tpu_custom_call.1} parent=15 // pred_fallthru
          _
        // Predicated region
        $region21: #{tpu_custom_call.1} parent=15 // pred_check
          %p191 = pneg %p91
        $region22: #{tpu_custom_call.1} parent=15 // pred_check_branch
          %193 = sbr.rel (%p191) target = $region24
        $region23: #{tpu_custom_call.1} parent=15 // pred_region
          %s194 = sand.u32 %s81, 1
          %s195 = scalar_lea.sflag [#allocation9], %s194
          %s196 = sand.u32 %s81, 1
          %s197 = smul.addr %s196, 64
          %s198 = scalar_lea.vmem [#allocation8], %s197
          %s199 = smul.u32 16, %s27
          %201 = vsyncadd %s195, 0
          %s202 = smul.addr %s199, 2
          %s203 = sadd.s32 %s26, %s202
          %s204 = smul.addr %s203, 4
          %s205 = scalar_lea.hbm %s1, %s204
          %s206 = sshll.u32 %s205, 4
          %s207 = int_to_ptr.hbm [resolvable:$true] %s206
          %s208 = sshll.u32 %s198, 4
          %s209 = int_to_ptr.vmem [resolvable:$true] %s208
          %214 = dma.hbm_to_vmem [thread:$0]  %s207, 1024, %s209, %s195, 128, 64, 4
        $region24: #{tpu_custom_call.1} parent=15 // pred_fallthru
          _
      $region16: #{tpu_custom_call.1} parent=5 // pred_fallthru
        _
      %p215 = scmp.le.s32.totalorder 1, %s17
      %p216 = scmp.lt.s32.totalorder %s17, 25
      %p217 = pnand %p215, %p216
      %p218 = pneg %p217
      // Predicated region
      $region25: #{tpu_custom_call.1} parent=5 // pred_check
        _
      $region26: #{tpu_custom_call.1} parent=5 // pred_check_branch
        %220 = sbr.rel (%p217) target = $region28
      $region27: #{tpu_custom_call.1} parent=5 // pred_region
        %s221 = ssub.s32 %s17, 1
        %s222 = sand.u32 %s56, 1
        %s223 = scalar_lea.sflag [#allocation6], %s222
        %s224 = sand.u32 %s56, 1
        %s225 = smul.addr %s224, 32
        %s226 = scalar_lea.vmem [#allocation5], %s225
        // Predicated region
        $region29: #{tpu_custom_call.1} parent=27 // pred_check
          %p227 = pneg %p69
        $region30: #{tpu_custom_call.1} parent=27 // pred_check_branch
          %229 = sbr.rel (%p227) target = $region32
        $region31: #{tpu_custom_call.1} parent=27 // pred_region
          %231 = dma.done %s223, 512
        $region32: #{tpu_custom_call.1} parent=27 // pred_fallthru
          _
        %s232 = sand.u32 %s84, 1
        %s233 = scalar_lea.sflag [#allocation9], %s232
        %s234 = sand.u32 %s84, 1
        %s235 = smul.addr %s234, 64
        %s236 = scalar_lea.vmem [#allocation8], %s235
        // Predicated region
        $region33: #{tpu_custom_call.1} parent=27 // pred_check
          %p237 = pneg %p97
        $region34: #{tpu_custom_call.1} parent=27 // pred_check_branch
          %239 = sbr.rel (%p237) target = $region36
        $region35: #{tpu_custom_call.1} parent=27 // pred_region
          %241 = dma.done %s233, 1024
        $region36: #{tpu_custom_call.1} parent=27 // pred_fallthru
          _
        %s242 = sand.u32 %s56, 1
        %s243 = scalar_lea.sflag [#allocation6], %s242
        %s244 = sand.u32 %s56, 1
        %s245 = smul.addr %s244, 32
        %s246 = scalar_lea.vmem [#allocation5], %s245
        %p247 = pneg %p69
        %p248 = pneg %p66
        %s249 = sand.u32 %s84, 1
        %s250 = scalar_lea.sflag [#allocation9], %s249
        %s251 = sand.u32 %s84, 1
        %s252 = smul.addr %s251, 64
        %s253 = scalar_lea.vmem [#allocation8], %s252
        %p254 = pneg %p97
        %p255 = pneg %p94
        %p256 = pneg %p125
        %p257 = pneg %p122
        %s258 = sand.u32 %s112, 1
        %s259 = scalar_lea.sflag [#allocation7], %s258
        %s260 = sand.u32 %s112, 1
        %s261 = smul.addr %s260, 16
        %s262 = scalar_lea.vmem [#allocation10], %s261
        %s263 = smul.u32 2, %s28
        %s264 = smul.u32 16, %s31
        %s265 = smul.u32 2, %s28
        %p266 = scmp.eq.s32.totalorder %s29, 0
        %p267 = scmp.eq.s32.totalorder %s30, 0
        %p268 = pnand %p266, %p267
        %p269 = pneg %p268
        // Predicated region
        $region37: #{tpu_custom_call.1} parent=27 // pred_check
          _
        $region38: #{tpu_custom_call.1} parent=27 // pred_check_branch
          %271 = sbr.rel (%p268) target = $region40
        $region39: #{tpu_custom_call.1} parent=27 // pred_region
          %s272 = smul.u32 %s31, 16
          %s273 = scalar_lea.vmem %s226, %s272 [#allocation5]
          %v274 = vld [vmem:[%s273] sm:$0xff]
          %v275 = vld [vmem:[%s273 + $0x8] sm:$0xff]
          %s276 = scalar_lea.vmem [#allocation2], %s272
          %277 = vst [vmem:[%s276] sm:$0xff] %v274
          %278 = vst [vmem:[%s276 + $0x8] sm:$0xff] %v275
          %s279 = scalar_lea.vmem [#allocation4], %s272
          %280 = vst [vmem:[%s279] sm:$0xff] %v274
          %281 = vst [vmem:[%s279 + $0x8] sm:$0xff] %v275
        $region40: #{tpu_custom_call.1} parent=27 // pred_fallthru
          _
        %s282 = smul.u32 %s31, 16
        %s283 = scalar_lea.vmem [#allocation2], %s282
        %v284 = vld [vmem:[%s283] sm:$0xff]
        %v285 = vld [vmem:[%s283 + $0x8] sm:$0xff]
        %v286 = vpack.c.bf16 %v285, %v284
        %v287 = vld [vmem:[%s236] sm:$0xf]
        %v288 = vld [vmem:[%s236 + $0x4] sm:$0xf]
        %v289 = vld [vmem:[%s236 + $0x8] sm:$0xf]
        %v290 = vld [vmem:[%s236 + $0xc] sm:$0xf]
        %v291 = vld [vmem:[%s236 + $0x10] sm:$0xf]
        %v292 = vld [vmem:[%s236 + $0x14] sm:$0xf]
        %v293 = vld [vmem:[%s236 + $0x18] sm:$0xf]
        %v294 = vld [vmem:[%s236 + $0x1c] sm:$0xf]
        %v295 = vld [vmem:[%s236 + $0x20] sm:$0xf]
        %v296 = vld [vmem:[%s236 + $0x24] sm:$0xf]
        %v297 = vld [vmem:[%s236 + $0x28] sm:$0xf]
        %v298 = vld [vmem:[%s236 + $0x2c] sm:$0xf]
        %v299 = vld [vmem:[%s236 + $0x30] sm:$0xf]
        %v300 = vld [vmem:[%s236 + $0x34] sm:$0xf]
        %v301 = vld [vmem:[%s236 + $0x38] sm:$0xf]
        %v302 = vld [vmem:[%s236 + $0x3c] sm:$0xf]
        %v319 = vunpack.c.l.b16 %v287
        %v320 = vunpack.c.l.b16 %v288
        %v321 = vunpack.c.l.b16 %v289
        %v322 = vunpack.c.l.b16 %v290
        %v323 = vunpack.c.l.b16 %v291
        %v324 = vunpack.c.l.b16 %v292
        %v325 = vunpack.c.l.b16 %v293
        %v326 = vunpack.c.l.b16 %v294
        %v327 = vunpack.c.l.b16 %v295
        %v328 = vunpack.c.l.b16 %v296
        %v329 = vunpack.c.l.b16 %v297
        %v330 = vunpack.c.l.b16 %v298
        %v331 = vunpack.c.l.b16 %v299
        %v332 = vunpack.c.l.b16 %v300
        %v333 = vunpack.c.l.b16 %v301
        %v334 = vunpack.c.l.b16 %v302
        %v335 = vpack.c.b16 %v320, %v319
        %v336 = vpack.c.b16 %v322, %v321
        %v337 = vpack.c.b16 %v324, %v323
        %v338 = vpack.c.b16 %v326, %v325
        %v339 = vpack.c.b16 %v328, %v327
        %v340 = vpack.c.b16 %v330, %v329
        %v341 = vpack.c.b16 %v332, %v331
        %v342 = vpack.c.b16 %v334, %v333
        %351 = vmatpush.bf16.msra.mxu0 %v342
        %352 = vmatpush.bf16.msra.mxu0 %v341
        %353 = vmatpush.bf16.msra.mxu0 %v340
        %354 = vmatpush.bf16.msra.mxu0 %v339
        %355 = vmatpush.bf16.msra.mxu0 %v338
        %356 = vmatpush.bf16.msra.mxu0 %v337
        %357 = vmatpush.bf16.msra.mxu0 %v336
        %358 = vmatpush.bf16.msra.mxu0 %v335
        %359 = vmatmul.bf16.gmra.mxu0 %v286
        %v360 = vpop.f32.mrf.mxu0
        %v361 = vadd.f32 0.0, %v360
        %v362 = vpop.f32.mrf.mxu0
        %v363 = vadd.f32 0.0, %v362
        %364 = vdwg.mxu0
        %p365 = scmp.eq.s32.totalorder %s31, 0
        // Predicated region
        $region41: #{tpu_custom_call.1} parent=27 // pred_check
          %p366 = pneg %p365
        $region42: #{tpu_custom_call.1} parent=27 // pred_check_branch
          %368 = sbr.rel (%p366) target = $region44
        $region43: #{tpu_custom_call.1} parent=27 // pred_region
          %s369 = smul.u32 %s30, 16
          %s370 = scalar_lea.vmem [#allocation3], %s369
          %371 = vst [vmem:[%s370] sm:$0xff] %v361
          %372 = vst [vmem:[%s370 + $0x8] sm:$0xff] %v363
        $region44: #{tpu_custom_call.1} parent=27 // pred_fallthru
          _
        %p373 = scmp.gt.s32.totalorder %s31, 0
        // Predicated region
        $region45: #{tpu_custom_call.1} parent=27 // pred_check
          %p374 = pneg %p373
        $region46: #{tpu_custom_call.1} parent=27 // pred_check_branch
          %376 = sbr.rel (%p374) target = $region48
        $region47: #{tpu_custom_call.1} parent=27 // pred_region
          %s377 = smul.u32 %s30, 16
          %s378 = scalar_lea.vmem [#allocation3], %s377
          %v379 = vld [vmem:[%s378] sm:$0xff]
          %v380 = vld [vmem:[%s378 + $0x8] sm:$0xff]
          %v381 = vadd.f32 %v379, %v361
          %v382 = vadd.f32 %v380, %v363
          %383 = vst [vmem:[%s378] sm:$0xff] %v381
          %384 = vst [vmem:[%s378 + $0x8] sm:$0xff] %v382
        $region48: #{tpu_custom_call.1} parent=27 // pred_fallthru
          _
        %p385 = scmp.eq.s32.totalorder %s31, 1
        // Predicated region
        $region49: #{tpu_custom_call.1} parent=27 // pred_check
          %p386 = pneg %p385
        $region50: #{tpu_custom_call.1} parent=27 // pred_check_branch
          %388 = sbr.rel (%p386) target = $region52
        $region51: #{tpu_custom_call.1} parent=27 // pred_region
          %s389 = smul.u32 %s30, 16
          %s390 = scalar_lea.vmem [#allocation4], %s389
          %v391 = vld [vmem:[%s390] sm:$0xff]
          %v392 = vld [vmem:[%s390 + $0x8] sm:$0xff]
          %s393 = scalar_lea.vmem [#allocation3], %s389
          %v394 = vld [vmem:[%s393] sm:$0xff]
          %v395 = vld [vmem:[%s393 + $0x8] sm:$0xff]
          %v396 = vadd.f32 %v391, %v394
          %v397 = vadd.f32 %v392, %v395
          %398 = vst [vmem:[%s390] sm:$0xff] %v396
          %399 = vst [vmem:[%s390 + $0x8] sm:$0xff] %v397
          %v400 = vmul.f32 %v396, 0.25
          %v401 = vmul.f32 %v397, 0.25
          %402 = vst [vmem:[%s262] sm:$0xff] %v400
          %403 = vst [vmem:[%s262 + $0x8] sm:$0xff] %v401
        $region52: #{tpu_custom_call.1} parent=27 // pred_fallthru
          _
        %p404 = scmp.eq.s32.totalorder %s30, 1
        %p405 = pnand %p385, %p404
        %p406 = pneg %p405
        // Predicated region
        $region53: #{tpu_custom_call.1} parent=27 // pred_check
          _
        $region54: #{tpu_custom_call.1} parent=27 // pred_check_branch
          %408 = sbr.rel (%p405) target = $region56
        $region55: #{tpu_custom_call.1} parent=27 // pred_region
          %v409 = vld [vmem:[#allocation3] sm:$0xff]
          %v410 = vld [vmem:[#allocation3 + $0x8] sm:$0xff]
          %v411 = vld [vmem:[#allocation3 + $0x10] sm:$0xff]
          %v412 = vld [vmem:[#allocation3 + $0x18] sm:$0xff]
          %413 = vst [vmem:[#allocation2] sm:$0xff] %v409
          %414 = vst [vmem:[#allocation2 + $0x8] sm:$0xff] %v410
          %415 = vst [vmem:[#allocation2 + $0x10] sm:$0xff] %v411
          %416 = vst [vmem:[#allocation2 + $0x18] sm:$0xff] %v412
        $region56: #{tpu_custom_call.1} parent=27 // pred_fallthru
          _
        %s417 = sand.u32 %s112, 1
        %s418 = scalar_lea.sflag [#allocation7], %s417
        %s419 = sand.u32 %s112, 1
        %s420 = smul.addr %s419, 16
        %s421 = scalar_lea.vmem [#allocation10], %s420
        // Predicated region
        $region57: #{tpu_custom_call.1} parent=27 // pred_check
          %p422 = pneg %p122
        $region58: #{tpu_custom_call.1} parent=27 // pred_check_branch
          %424 = sbr.rel (%p422) target = $region60
        $region59: #{tpu_custom_call.1} parent=27 // pred_region
          %s425 = smul.u32 2, %s28
          %427 = vsyncadd %s418, 0
          %s428 = smul.addr %s425, 2
          %s429 = sadd.s32 %s30, %s428
          %s430 = smul.addr %s429, 8
          %s431 = scalar_lea.hbm %s2, %s430
          %s432 = sshll.u32 %s421, 4
          %s433 = int_to_ptr.vmem [resolvable:$true] %s432
          %s434 = sshll.u32 %s431, 4
          %s435 = int_to_ptr.hbm [resolvable:$true] %s434
          %440 = dma.vmem_to_hbm [thread:$0]  %s433, 256, %s435, %s418, 128, 256, 8
        $region60: #{tpu_custom_call.1} parent=27 // pred_fallthru
          _
      $region28: #{tpu_custom_call.1} parent=5 // pred_fallthru
        _
      %p441 = scmp.le.s32.totalorder 2, %s17
      // Predicated region
      $region61: #{tpu_custom_call.1} parent=5 // pred_check
        %p442 = pneg %p441
      $region62: #{tpu_custom_call.1} parent=5 // pred_check_branch
        %444 = sbr.rel (%p442) target = $region64
      $region63: #{tpu_custom_call.1} parent=5 // pred_region
        %s445 = ssub.s32 %s17, 2
        // Predicated region
        $region65: #{tpu_custom_call.1} parent=63 // pred_check
          %p446 = pneg %p128
        $region66: #{tpu_custom_call.1} parent=63 // pred_check_branch
          %448 = sbr.rel (%p446) target = $region68
        $region67: #{tpu_custom_call.1} parent=63 // pred_region
          %s449 = sand.u32 %s113, 1
          %s450 = scalar_lea.sflag [#allocation7], %s449
          %s451 = sand.u32 %s113, 1
          %s452 = smul.addr %s451, 16
          %s453 = scalar_lea.vmem [#allocation10], %s452
          %455 = dma.done %s450, 256
        $region68: #{tpu_custom_call.1} parent=63 // pred_fallthru
          _
      $region64: #{tpu_custom_call.1} parent=5 // pred_fallthru
        _
    $region6: #{tpu_custom_call.1} parent=1 // loop_footer
      %s21 = sadd.s32 1, %s17
    $region7: #{tpu_custom_call.1} parent=1 // loop_footer_branch
      %16 = sbr.rel target = $region3
    $region8: #{tpu_custom_call.1} parent=1 // loop_exit
      _
    %456 = vsyncpa [#allocation6], 1
    %s457 = scalar_lea.sflag [#allocation6], 1
    %458 = vsyncpa %s457, 1
    %459 = vsyncpa [#allocation9], 1
    %s460 = scalar_lea.sflag [#allocation9], 1
    %461 = vsyncpa %s460, 1
    %462 = vsyncpa [#allocation7], 1
    %s463 = scalar_lea.sflag [#allocation7], 1
    %464 = vsyncpa %s463, 1

</llo_original>
